<compile_context>
chip_gen: v5e
topology: v5e:2x2
jax: 0.10.0
libtpu: 0.0.40
codegen_flags: <defaults>
</compile_context>

<pallas_src>
import jax
import jax.numpy as jnp
from jax.experimental import pallas as pl
from jax.experimental.pallas import tpu as pltpu


# ---------------------------------------------------------------------------
# Kernels
# ---------------------------------------------------------------------------
def _make_pool_kernel(plane_shifts, Ho, Wo):
    """Builds a kernel computing a 3x3 max pool from pre-sliced 'phase' planes.

    plane_shifts[i] is the list of (dh, dw) unit shifts whose windows are read
    from input plane i; the pooled result is the elementwise max over all of
    them.  All in-kernel slices are static and unit-stride.
    """

    def kernel(*refs):
        *plane_refs, o_ref = refs          # inputs..., output
        pooled = None
        for p_ref, shifts in zip(plane_refs, plane_shifts):
            xv = p_ref[...]                # (C, Hp_i, Wp_i)
            for dh, dw in shifts:
                win = xv[:, dh:dh + Ho, dw:dw + Wo]
                pooled = win if pooled is None else jnp.maximum(pooled, win)
        o_ref[...] = pooled.astype(o_ref.dtype)

    return kernel


def _conv1x1_kernel(x_ref, w_ref, o_ref):
    # x_ref: (C, M) one pooled sample flattened over space
    # w_ref: (K, C) 1x1 conv weight (VMEM-resident across the grid)
    # o_ref: (K, M)
    o_ref[...] = jnp.dot(
        w_ref[...], x_ref[...], preferred_element_type=jnp.float32
    ).astype(o_ref.dtype)


# ---------------------------------------------------------------------------
# Wrappers
# ---------------------------------------------------------------------------
def _max_pool_3x3(x, stride):
    """MaxPool2d(kernel_size=3, stride=stride, padding=1) for NCHW float32."""
    N, C, H, W = x.shape
    Ho = (H + 2 - 3) // stride + 1
    Wo = (W + 2 - 3) // stride + 1
    xp = jnp.pad(x, ((0, 0), (0, 0), (1, 1), (1, 1)), constant_values=-jnp.inf)

    if stride == 1:
        planes = [xp]                                   # (N, C, H+2, W+2)
        shifts = [[(dh, dw) for dh in range(3) for dw in range(3)]]
    elif stride == 2:
        # Even/odd phase decomposition of the padded input (pure indexing, XLA).
        # pooled[ho, wo] = max over padded rows {2ho, 2ho+1, 2ho+2} and cols
        # {2wo, 2wo+1, 2wo+2}; in phase coordinates that is a max over unit
        # shifts of the four planes below.
        ee = xp[:, :, 0:2 * Ho + 1:2, 0:2 * Wo + 1:2]   # (N, C, Ho+1, Wo+1)
        eo = xp[:, :, 0:2 * Ho + 1:2, 1:2 * Wo:2]       # (N, C, Ho+1, Wo)
        oe = xp[:, :, 1:2 * Ho:2,     0:2 * Wo + 1:2]   # (N, C, Ho,   Wo+1)
        oo = xp[:, :, 1:2 * Ho:2,     1:2 * Wo:2]       # (N, C, Ho,   Wo)
        planes = [ee, eo, oe, oo]
        shifts = [
            [(0, 0), (0, 1), (1, 0), (1, 1)],           # ee: rows 2ho,2ho+2 / cols 2wo,2wo+2
            [(0, 0), (1, 0)],                           # eo: rows 2ho,2ho+2 / col 2wo+1
            [(0, 0), (0, 1)],                           # oe: row 2ho+1 / cols 2wo,2wo+2
            [(0, 0)],                                   # oo: row 2ho+1 / col 2wo+1
        ]
    else:
        raise NotImplementedError("MaxPool kernel supports stride 1 or 2")

    in_specs = [
        pl.BlockSpec((None, C, p.shape[2], p.shape[3]), lambda n: (n, 0, 0, 0))
        for p in planes
    ]
    return pl.pallas_call(
        _make_pool_kernel(shifts, Ho, Wo),
        out_shape=jax.ShapeDtypeStruct((N, C, Ho, Wo), x.dtype),
        grid=(N,),
        in_specs=in_specs,
        out_specs=pl.BlockSpec((None, C, Ho, Wo), lambda n: (n, 0, 0, 0)),
        compiler_params=pltpu.CompilerParams(dimension_semantics=("parallel",)),
    )(*planes)


def _conv_1x1(x, w):
    """1x1 conv, no bias.  x: (N, C, Ho, Wo), w: (K, C, 1, 1) -> (N, K, Ho, Wo)."""
    N, C, Ho, Wo = x.shape
    K = w.shape[0]
    M = Ho * Wo
    xf = x.reshape(N, C, M)          # trivial row-major reshape (no data movement)
    wm = w.reshape(K, C)
    out = pl.pallas_call(
        _conv1x1_kernel,
        out_shape=jax.ShapeDtypeStruct((N, K, M), x.dtype),
        grid=(N,),
        in_specs=[
            pl.BlockSpec((None, C, M), lambda n: (n, 0, 0)),
            pl.BlockSpec((K, C), lambda n: (0, 0)),      # weight stays resident
        ],
        out_specs=pl.BlockSpec((None, K, M), lambda n: (n, 0, 0)),
        compiler_params=pltpu.CompilerParams(dimension_semantics=("parallel",)),
    )(xf, wm)
    return out.reshape(N, K, Ho, Wo)


def max_pool_forward(x, conv_w=None, *, stride=1, double=False):
    """Forward pass of the DARTS `MaxPool` module (NCHW, float32)."""
    y = _max_pool_3x3(x, stride)
    if stride == 2 or double:
        assert conv_w is not None, "1x1 conv weight required when stride==2 or double"
        y = _conv_1x1(y, conv_w)
    return y


# ---------------------------------------------------------------------------
# Demo / self-check
# ---------------------------------------------------------------------------
if __name__ == "__main__":
    key = jax.random.PRNGKey(0)
    k_x, k_w = jax.random.split(key)

    # MaxPool(in_planes=4, out_planes=16, stride=2): x (2, 4, 16, 16)
    N, C, H, W = 2, 4, 16, 16
    out_planes, stride = 16, 2

    x = jax.random.normal(k_x, (N, C, H, W), dtype=jnp.float32)
    w = 0.2 * jax.random.normal(k_w, (out_planes, C, 1, 1), dtype=jnp.float32)

    out = jax.block_until_ready(max_pool_forward(x, w, stride=stride))
    assert out.shape == (N, out_planes, H // 2, W // 2), out.shape

    # Reference (pure XLA): MaxPool2d(3, stride=2, padding=1) + 1x1 conv.
    ref_pool = jax.lax.reduce_window(
        x, -jnp.inf, jax.lax.max,
        window_dimensions=(1, 1, 3, 3),
        window_strides=(1, 1, stride, stride),
        padding=((0, 0), (0, 0), (1, 1), (1, 1)))
    ref = jnp.einsum("kc,nchw->nkhw", w.reshape(out_planes, C), ref_pool,
                     precision=jax.lax.Precision.HIGHEST)
    max_err = float(jnp.max(jnp.abs(out - ref)))
    assert jnp.allclose(out, ref, atol=1e-2, rtol=1e-2), max_err

    # stride=1 / double=False branch: max-pool only, exact match expected.
    out_s1 = jax.block_until_ready(max_pool_forward(x, stride=1))
    ref_s1 = jax.lax.reduce_window(
        x, -jnp.inf, jax.lax.max,
        window_dimensions=(1, 1, 3, 3),
        window_strides=(1, 1, 1, 1),
        padding=((0, 0), (0, 0), (1, 1), (1, 1)))
    assert out_s1.shape == (N, C, H, W)
    assert jnp.array_equal(out_s1, ref_s1)

    print("KERNEL_OK")
</pallas_src>

<mosaic_0001>
module attributes {stable_mosaic.version = 11 : i64} {
  func.func @kernel(%arg0: i32, %arg1: memref<1x4x9x9xf32, #tpu.memory_space<vmem>>, %arg2: memref<1x4x9x8xf32, #tpu.memory_space<vmem>>, %arg3: memref<1x4x8x9xf32, #tpu.memory_space<vmem>>, %arg4: memref<1x4x8x8xf32, #tpu.memory_space<vmem>>, %arg5: memref<1x4x8x8xf32, #tpu.memory_space<vmem>>) attributes {dimension_semantics = [#tpu.dimension_semantics<parallel>], iteration_bounds = array<i64: 2>, scalar_prefetch = 0 : i64, scratch_operands = 0 : i64, tpu.core_type = #tpu.core_type<tc>, window_params = [{transform_indices = @transform_0, window_bounds = array<i64: 1, 4, 9, 9>}, {transform_indices = @transform_1, window_bounds = array<i64: 1, 4, 9, 8>}, {transform_indices = @transform_2, window_bounds = array<i64: 1, 4, 8, 9>}, {transform_indices = @transform_3, window_bounds = array<i64: 1, 4, 8, 8>}, {transform_indices = @transform_4, window_bounds = array<i64: 1, 4, 8, 8>}]} {
    %c0 = arith.constant 0 : index
    %c0_0 = arith.constant 0 : index
    %c0_1 = arith.constant 0 : index
    %c0_2 = arith.constant 0 : index
    %0 = vector.load %arg1[%c0, %c0_0, %c0_1, %c0_2] : memref<1x4x9x9xf32, #tpu.memory_space<vmem>>, vector<1x4x9x9xf32>
    %1 = vector.shape_cast %0 : vector<1x4x9x9xf32> to vector<4x9x9xf32>
    %2 = vector.extract_strided_slice %1 {offsets = [0, 0, 0], sizes = [4, 8, 8], strides = [1, 1, 1]} : vector<4x9x9xf32> to vector<4x8x8xf32>
    %3 = vector.extract_strided_slice %1 {offsets = [0, 0, 1], sizes = [4, 8, 8], strides = [1, 1, 1]} : vector<4x9x9xf32> to vector<4x8x8xf32>
    %4 = arith.maximumf %2, %3 : vector<4x8x8xf32>
    %5 = vector.extract_strided_slice %1 {offsets = [0, 1, 0], sizes = [4, 8, 8], strides = [1, 1, 1]} : vector<4x9x9xf32> to vector<4x8x8xf32>
    %6 = arith.maximumf %4, %5 : vector<4x8x8xf32>
    %7 = vector.extract_strided_slice %1 {offsets = [0, 1, 1], sizes = [4, 8, 8], strides = [1, 1, 1]} : vector<4x9x9xf32> to vector<4x8x8xf32>
    %8 = arith.maximumf %6, %7 : vector<4x8x8xf32>
    %c0_3 = arith.constant 0 : index
    %c0_4 = arith.constant 0 : index
    %c0_5 = arith.constant 0 : index
    %c0_6 = arith.constant 0 : index
    %9 = vector.load %arg2[%c0_3, %c0_4, %c0_5, %c0_6] : memref<1x4x9x8xf32, #tpu.memory_space<vmem>>, vector<1x4x9x8xf32>
    %10 = vector.shape_cast %9 : vector<1x4x9x8xf32> to vector<4x9x8xf32>
    %11 = vector.extract_strided_slice %10 {offsets = [0, 0, 0], sizes = [4, 8, 8], strides = [1, 1, 1]} : vector<4x9x8xf32> to vector<4x8x8xf32>
    %12 = arith.maximumf %8, %11 : vector<4x8x8xf32>
    %13 = vector.extract_strided_slice %10 {offsets = [0, 1, 0], sizes = [4, 8, 8], strides = [1, 1, 1]} : vector<4x9x8xf32> to vector<4x8x8xf32>
    %14 = arith.maximumf %12, %13 : vector<4x8x8xf32>
    %c0_7 = arith.constant 0 : index
    %c0_8 = arith.constant 0 : index
    %c0_9 = arith.constant 0 : index
    %c0_10 = arith.constant 0 : index
    %15 = vector.load %arg3[%c0_7, %c0_8, %c0_9, %c0_10] : memref<1x4x8x9xf32, #tpu.memory_space<vmem>>, vector<1x4x8x9xf32>
    %16 = vector.shape_cast %15 : vector<1x4x8x9xf32> to vector<4x8x9xf32>
    %17 = vector.extract_strided_slice %16 {offsets = [0, 0, 0], sizes = [4, 8, 8], strides = [1, 1, 1]} : vector<4x8x9xf32> to vector<4x8x8xf32>
    %18 = arith.maximumf %14, %17 : vector<4x8x8xf32>
    %19 = vector.extract_strided_slice %16 {offsets = [0, 0, 1], sizes = [4, 8, 8], strides = [1, 1, 1]} : vector<4x8x9xf32> to vector<4x8x8xf32>
    %20 = arith.maximumf %18, %19 : vector<4x8x8xf32>
    %c0_11 = arith.constant 0 : index
    %c0_12 = arith.constant 0 : index
    %c0_13 = arith.constant 0 : index
    %c0_14 = arith.constant 0 : index
    %21 = vector.load %arg4[%c0_11, %c0_12, %c0_13, %c0_14] : memref<1x4x8x8xf32, #tpu.memory_space<vmem>>, vector<1x4x8x8xf32>
    %22 = vector.shape_cast %21 : vector<1x4x8x8xf32> to vector<4x8x8xf32>
    %23 = arith.maximumf %20, %22 : vector<4x8x8xf32>
    %c0_15 = arith.constant 0 : index
    %c0_16 = arith.constant 0 : index
    %c0_17 = arith.constant 0 : index
    %c0_18 = arith.constant 0 : index
    %24 = vector.load %arg5[%c0_15, %c0_16, %c0_17, %c0_18] : memref<1x4x8x8xf32, #tpu.memory_space<vmem>>, vector<1x4x8x8xf32>
    %25 = vector.shape_cast %24 : vector<1x4x8x8xf32> to vector<4x8x8xf32>
    %26 = vector.shape_cast %23 : vector<4x8x8xf32> to vector<1x4x8x8xf32>
    tpu.vector_store %arg5[%c0_15, %c0_16, %c0_17, %c0_18], %26 {strides = array<i32>} : memref<1x4x8x8xf32, #tpu.memory_space<vmem>>, vector<1x4x8x8xf32>,
    return
  }
  func.func @transform_0(%arg0: i32) -> (i32, i32, i32, i32) {
    %c0_i32 = arith.constant 0 : i32
    %c0_i32_0 = arith.constant 0 : i32
    %c0_i32_1 = arith.constant 0 : i32
    %c0_i32_2 = arith.constant 0 : i32
    return %arg0, %c0_i32, %c0_i32_0, %c0_i32_1 : i32, i32, i32, i32
  }
  func.func @transform_1(%arg0: i32) -> (i32, i32, i32, i32) {
    %c0_i32 = arith.constant 0 : i32
    %c0_i32_0 = arith.constant 0 : i32
    %c0_i32_1 = arith.constant 0 : i32
    %c0_i32_2 = arith.constant 0 : i32
    return %arg0, %c0_i32, %c0_i32_0, %c0_i32_1 : i32, i32, i32, i32
  }
  func.func @transform_2(%arg0: i32) -> (i32, i32, i32, i32) {
    %c0_i32 = arith.constant 0 : i32
    %c0_i32_0 = arith.constant 0 : i32
    %c0_i32_1 = arith.constant 0 : i32
    %c0_i32_2 = arith.constant 0 : i32
    return %arg0, %c0_i32, %c0_i32_0, %c0_i32_1 : i32, i32, i32, i32
  }
  func.func @transform_3(%arg0: i32) -> (i32, i32, i32, i32) {
    %c0_i32 = arith.constant 0 : i32
    %c0_i32_0 = arith.constant 0 : i32
    %c0_i32_1 = arith.constant 0 : i32
    %c0_i32_2 = arith.constant 0 : i32
    return %arg0, %c0_i32, %c0_i32_0, %c0_i32_1 : i32, i32, i32, i32
  }
  func.func @transform_4(%arg0: i32) -> (i32, i32, i32, i32) {
    %c0_i32 = arith.constant 0 : i32
    %c0_i32_0 = arith.constant 0 : i32
    %c0_i32_1 = arith.constant 0 : i32
    %c0_i32_2 = arith.constant 0 : i32
    return %arg0, %c0_i32, %c0_i32_0, %c0_i32_1 : i32, i32, i32, i32
  }
}

</mosaic_0001>

<llo_original>
// kernel: tpu_custom_call.1
$region0: #{tpu_custom_call.1}
  #allocation0 [shape = 'u32[]', space=smem, size = 0x4, offset = 0x4, fixed_abs, tag = 'smem constant byte address 0x4 - core index']
  #allocation1 [shape = 'u32[72,128]{1,0:T(1,128)}', space=vmem, size = 0x9000, scoped, tag = 'internal scratch']
  %s0 = inlined_call_operand.vmem [shape: f32[2,4,9,9], index: 0, kind: input, shape index: {}]
  %s1 = inlined_call_operand.vmem [shape: f32[2,4,9,8], index: 1, kind: input, shape index: {}]
  %s2 = inlined_call_operand.vmem [shape: f32[2,4,8,9], index: 2, kind: input, shape index: {}]
  %s3 = inlined_call_operand.vmem [shape: f32[2,4,8,8], index: 3, kind: input, shape index: {}]
  %s4 = inlined_call_operand.hbm [shape: f32[2,4,8,8], index: 4, kind: output, shape index: {}]
  %s5 = sld [smem:[#allocation0]]
  $region49: #{tpu_custom_call.1} parent=0
    _
  %s7 = ssub.s32 1, %s5
  %s8 = scalar_select 0, %s7, %s5
  $region1: #{tpu_custom_call.1} parent=0
    #allocation2 [shape = 'u8[32768]{0}', space=vmem, size = 0x8000, scoped, tag = 'output window, operand 0']
    #allocation3 [shape = 's32[2]{0}', space=sflag, size = 0x8, scoped, tag = 'scoped memory for tpu_custom_call.1']
    %9 = vsyncpa [#allocation3], 0
    %s10 = scalar_lea.sflag [#allocation3], 1
    %11 = vsyncpa %s10, 0
    loop: start=0, step=1, limit=4
    $region2: #{tpu_custom_call.1} parent=1 // loop_pre_header
      _
    $region3: #{tpu_custom_call.1} parent=1 // loop_header
      %s13 = sphi 0, %s17
      %p14 = scmp.ge.s32.totalorder %s13, 4
      %s23 = sphi 0, %s25
      %s26 = sphi 0, %s23
      %s27 = sphi 0, %s26
      %s43 = sphi 0, %s27
      %s49 = sphi 0, %s51
      %s52 = sphi 0, %s49
      %s53 = sphi 0, %s52
      %s69 = sphi 0, %s53
      %s75 = sphi 0, %s77
      %s78 = sphi 0, %s75
      %s79 = sphi 0, %s78
      %s95 = sphi 0, %s79
      %s101 = sphi 0, %s103
      %s104 = sphi 0, %s101
      %s105 = sphi 0, %s104
      %s121 = sphi 0, %s105
      %s127 = sphi 0, %s129
      %s130 = sphi 0, %s127
      %s131 = sphi 0, %s130
      %s147 = sphi 0, %s131
    $region4: #{tpu_custom_call.1} parent=1 // loop_header_branch
      %16 = sbr.rel (%p14) target = $region8
    $region5: #{tpu_custom_call.1} parent=1 // loop_body
      %s18 = ssub.s32 %s13, 1
      %s19 = ssub.s32 %s13, 2
      %s20 = sadd.s32 %s13, 1
      %s21 = ssub.s32 %s13, %s20
      %p22 = scmp.eq.s32.totalorder %s21, 0
      %s24 = sadd.s32 %s23, 1
      %s25 = scalar_select %p22, %s23, %s24
      %p28 = pneg %p22
      %p29 = scmp.eq.s32.totalorder %s13, 1
      %p30 = por %p28, %p29
      %p31 = scmp.ne.s32.totalorder %s23, %s26
      %p32 = scmp.eq.s32.totalorder %s13, 0
      %p33 = por %p31, %p32
      %p34 = scmp.ne.s32.totalorder %s23, %s26
      %p35 = scmp.eq.s32.totalorder %s18, 1
      %p36 = por %p34, %p35
      %p37 = scmp.ne.s32.totalorder %s26, %s27
      %p38 = scmp.eq.s32.totalorder %s18, 0
      %p39 = por %p37, %p38
      %p40 = scmp.ne.s32.totalorder %s26, %s27
      %p41 = scmp.eq.s32.totalorder %s19, 1
      %p42 = por %p40, %p41
      %p44 = scmp.ne.s32.totalorder %s27, %s43
      %p45 = scmp.eq.s32.totalorder %s19, 0
      %p46 = por %p44, %p45
      %s47 = ssub.s32 %s13, %s20
      %p48 = scmp.eq.s32.totalorder %s47, 0
      %s50 = sadd.s32 %s49, 1
      %s51 = scalar_select %p48, %s49, %s50
      %p54 = pneg %p48
      %p55 = scmp.eq.s32.totalorder %s13, 1
      %p56 = por %p54, %p55
      %p57 = scmp.ne.s32.totalorder %s49, %s52
      %p58 = scmp.eq.s32.totalorder %s13, 0
      %p59 = por %p57, %p58
      %p60 = scmp.ne.s32.totalorder %s49, %s52
      %p61 = scmp.eq.s32.totalorder %s18, 1
      %p62 = por %p60, %p61
      %p63 = scmp.ne.s32.totalorder %s52, %s53
      %p64 = scmp.eq.s32.totalorder %s18, 0
      %p65 = por %p63, %p64
      %p66 = scmp.ne.s32.totalorder %s52, %s53
      %p67 = scmp.eq.s32.totalorder %s19, 1
      %p68 = por %p66, %p67
      %p70 = scmp.ne.s32.totalorder %s53, %s69
      %p71 = scmp.eq.s32.totalorder %s19, 0
      %p72 = por %p70, %p71
      %s73 = ssub.s32 %s13, %s20
      %p74 = scmp.eq.s32.totalorder %s73, 0
      %s76 = sadd.s32 %s75, 1
      %s77 = scalar_select %p74, %s75, %s76
      %p80 = pneg %p74
      %p81 = scmp.eq.s32.totalorder %s13, 1
      %p82 = por %p80, %p81
      %p83 = scmp.ne.s32.totalorder %s75, %s78
      %p84 = scmp.eq.s32.totalorder %s13, 0
      %p85 = por %p83, %p84
      %p86 = scmp.ne.s32.totalorder %s75, %s78
      %p87 = scmp.eq.s32.totalorder %s18, 1
      %p88 = por %p86, %p87
      %p89 = scmp.ne.s32.totalorder %s78, %s79
      %p90 = scmp.eq.s32.totalorder %s18, 0
      %p91 = por %p89, %p90
      %p92 = scmp.ne.s32.totalorder %s78, %s79
      %p93 = scmp.eq.s32.totalorder %s19, 1
      %p94 = por %p92, %p93
      %p96 = scmp.ne.s32.totalorder %s79, %s95
      %p97 = scmp.eq.s32.totalorder %s19, 0
      %p98 = por %p96, %p97
      %s99 = ssub.s32 %s13, %s20
      %p100 = scmp.eq.s32.totalorder %s99, 0
      %s102 = sadd.s32 %s101, 1
      %s103 = scalar_select %p100, %s101, %s102
      %p106 = pneg %p100
      %p107 = scmp.eq.s32.totalorder %s13, 1
      %p108 = por %p106, %p107
      %p109 = scmp.ne.s32.totalorder %s101, %s104
      %p110 = scmp.eq.s32.totalorder %s13, 0
      %p111 = por %p109, %p110
      %p112 = scmp.ne.s32.totalorder %s101, %s104
      %p113 = scmp.eq.s32.totalorder %s18, 1
      %p114 = por %p112, %p113
      %p115 = scmp.ne.s32.totalorder %s104, %s105
      %p116 = scmp.eq.s32.totalorder %s18, 0
      %p117 = por %p115, %p116
      %p118 = scmp.ne.s32.totalorder %s104, %s105
      %p119 = scmp.eq.s32.totalorder %s19, 1
      %p120 = por %p118, %p119
      %p122 = scmp.ne.s32.totalorder %s105, %s121
      %p123 = scmp.eq.s32.totalorder %s19, 0
      %p124 = por %p122, %p123
      %s125 = ssub.s32 %s13, %s20
      %p126 = scmp.eq.s32.totalorder %s125, 0
      %s128 = sadd.s32 %s127, 1
      %s129 = scalar_select %p126, %s127, %s128
      %p132 = pneg %p126
      %p133 = scmp.eq.s32.totalorder %s13, 1
      %p134 = por %p132, %p133
      %p135 = scmp.ne.s32.totalorder %s127, %s130
      %p136 = scmp.eq.s32.totalorder %s13, 0
      %p137 = por %p135, %p136
      %p138 = scmp.ne.s32.totalorder %s127, %s130
      %p139 = scmp.eq.s32.totalorder %s18, 1
      %p140 = por %p138, %p139
      %p141 = scmp.ne.s32.totalorder %s130, %s131
      %p142 = scmp.eq.s32.totalorder %s18, 0
      %p143 = por %p141, %p142
      %p144 = scmp.ne.s32.totalorder %s130, %s131
      %p145 = scmp.eq.s32.totalorder %s19, 1
      %p146 = por %p144, %p145
      %p148 = scmp.ne.s32.totalorder %s131, %s147
      %p149 = scmp.eq.s32.totalorder %s19, 0
      %p150 = por %p148, %p149
      %p151 = scmp.le.s32.totalorder 1, %s13
      %p152 = scmp.lt.s32.totalorder %s13, 3
      %p153 = pnand %p151, %p152
      %p154 = pneg %p153
      // Predicated region
      $region9: #{tpu_custom_call.1} parent=5 // pred_check
        _
      $region10: #{tpu_custom_call.1} parent=5 // pred_check_branch
        %156 = sbr.rel (%p153) target = $region12
      $region11: #{tpu_custom_call.1} parent=5 // pred_region
        %s157 = ssub.s32 %s13, 1
      $region12: #{tpu_custom_call.1} parent=5 // pred_fallthru
        _
      %p158 = scmp.lt.s32.totalorder %s13, 2
      // Predicated region
      $region13: #{tpu_custom_call.1} parent=5 // pred_check
        %p159 = pneg %p158
      $region14: #{tpu_custom_call.1} parent=5 // pred_check_branch
        %161 = sbr.rel (%p159) target = $region16
      $region15: #{tpu_custom_call.1} parent=5 // pred_region
        // Predicated region
        $region17: #{tpu_custom_call.1} parent=15 // pred_check
          %p162 = pneg %p33
        $region18: #{tpu_custom_call.1} parent=15 // pred_check_branch
          %164 = sbr.rel (%p162) target = $region20
        $region19: #{tpu_custom_call.1} parent=15 // pred_region
          %p165 = scmp.lt.s32.totalorder %s13, 1
          %s166 = scalar_select %p165, %s13, 1
          %s167 = smul.addr %s166, 8
          %s168 = smul.addr %s167, 8
          %s169 = scalar_lea.vmem %s0, %s168
        $region20: #{tpu_custom_call.1} parent=15 // pred_fallthru
          _
        // Predicated region
        $region21: #{tpu_custom_call.1} parent=15 // pred_check
          %p170 = pneg %p59
        $region22: #{tpu_custom_call.1} parent=15 // pred_check_branch
          %172 = sbr.rel (%p170) target = $region24
        $region23: #{tpu_custom_call.1} parent=15 // pred_region
          %p173 = scmp.lt.s32.totalorder %s13, 1
          %s174 = scalar_select %p173, %s13, 1
          %s175 = smul.addr %s174, 8
          %s176 = smul.addr %s175, 8
          %s177 = scalar_lea.vmem %s1, %s176
        $region24: #{tpu_custom_call.1} parent=15 // pred_fallthru
          _
        // Predicated region
        $region25: #{tpu_custom_call.1} parent=15 // pred_check
          %p178 = pneg %p85
        $region26: #{tpu_custom_call.1} parent=15 // pred_check_branch
          %180 = sbr.rel (%p178) target = $region28
        $region27: #{tpu_custom_call.1} parent=15 // pred_region
          %p181 = scmp.lt.s32.totalorder %s13, 1
          %s182 = scalar_select %p181, %s13, 1
          %s183 = smul.addr %s182, 4
          %s184 = smul.addr %s183, 8
          %s185 = scalar_lea.vmem %s2, %s184
        $region28: #{tpu_custom_call.1} parent=15 // pred_fallthru
          _
        // Predicated region
        $region29: #{tpu_custom_call.1} parent=15 // pred_check
          %p186 = pneg %p111
        $region30: #{tpu_custom_call.1} parent=15 // pred_check_branch
          %188 = sbr.rel (%p186) target = $region32
        $region31: #{tpu_custom_call.1} parent=15 // pred_region
          %p189 = scmp.lt.s32.totalorder %s13, 1
          %s190 = scalar_select %p189, %s13, 1
          %s191 = smul.addr %s190, 4
          %s192 = smul.addr %s191, 8
          %s193 = scalar_lea.vmem %s3, %s192
        $region32: #{tpu_custom_call.1} parent=15 // pred_fallthru
          _
      $region16: #{tpu_custom_call.1} parent=5 // pred_fallthru
        _
      %p194 = scmp.le.s32.totalorder 1, %s13
      %p195 = scmp.lt.s32.totalorder %s13, 3
      %p196 = pnand %p194, %p195
      %p197 = pneg %p196
      // Predicated region
      $region33: #{tpu_custom_call.1} parent=5 // pred_check
        _
      $region34: #{tpu_custom_call.1} parent=5 // pred_check_branch
        %199 = sbr.rel (%p196) target = $region36
      $region35: #{tpu_custom_call.1} parent=5 // pred_region
        %s200 = ssub.s32 %s13, 1
        %p201 = scmp.lt.s32.totalorder %s18, 1
        %s202 = scalar_select %p201, %s18, 1
        %s203 = smul.addr %s202, 8
        %s204 = smul.addr %s203, 8
        %s205 = scalar_lea.vmem %s0, %s204
        %p206 = pneg %p39
        %p207 = pneg %p36
        %p208 = scmp.lt.s32.totalorder %s18, 1
        %s209 = scalar_select %p208, %s18, 1
        %s210 = smul.addr %s209, 8
        %s211 = smul.addr %s210, 8
        %s212 = scalar_lea.vmem %s1, %s211
        %p213 = pneg %p65
        %p214 = pneg %p62
        %p215 = scmp.lt.s32.totalorder %s18, 1
        %s216 = scalar_select %p215, %s18, 1
        %s217 = smul.addr %s216, 4
        %s218 = smul.addr %s217, 8
        %s219 = scalar_lea.vmem %s2, %s218
        %p220 = pneg %p91
        %p221 = pneg %p88
        %p222 = scmp.lt.s32.totalorder %s18, 1
        %s223 = scalar_select %p222, %s18, 1
        %s224 = smul.addr %s223, 4
        %s225 = smul.addr %s224, 8
        %s226 = scalar_lea.vmem %s3, %s225
        %p227 = pneg %p117
        %p228 = pneg %p114
        %p229 = pneg %p143
        %p230 = pneg %p140
        %s231 = sand.u32 %s130, 1
        %s232 = scalar_lea.sflag [#allocation3], %s231
        %s233 = sand.u32 %s130, 1
        %s234 = smul.addr %s233, 32
        %s235 = scalar_lea.vmem [#allocation2], %s234
        %p236 = scmp.lt.s32.totalorder %s18, 1
        %s237 = scalar_select %p236, %s18, 1
        %s238 = smul.addr %s237, 8
        %s239 = smul.addr %s238, 8
        %s240 = scalar_lea.vmem %s0, %s239
        %p241 = scmp.lt.s32.totalorder %s18, 1
        %s242 = scalar_select %p241, %s18, 1
        %s243 = smul.addr %s242, 8
        %s244 = smul.addr %s243, 8
        %s245 = scalar_lea.vmem %s1, %s244
        %p246 = scmp.lt.s32.totalorder %s18, 1
        %s247 = scalar_select %p246, %s18, 1
        %s248 = smul.addr %s247, 4
        %s249 = smul.addr %s248, 8
        %s250 = scalar_lea.vmem %s2, %s249
        %p251 = scmp.lt.s32.totalorder %s18, 1
        %s252 = scalar_select %p251, %s18, 1
        %s253 = smul.addr %s252, 4
        %s254 = smul.addr %s253, 8
        %s255 = scalar_lea.vmem %s3, %s254
        %v256 = vld [vmem:[%s240] sm:$0xff]
        %v257 = vld [vmem:[%s240 + $0x8] sm:$0x1]
        %v258 = vld [vmem:[%s240 + $0x10] sm:$0xff]
        %v259 = vld [vmem:[%s240 + $0x18] sm:$0x1]
        %v260 = vld [vmem:[%s240 + $0x20] sm:$0xff]
        %v261 = vld [vmem:[%s240 + $0x28] sm:$0x1]
        %v262 = vld [vmem:[%s240 + $0x30] sm:$0xff]
        %v263 = vld [vmem:[%s240 + $0x38] sm:$0x1]
        %268 = vrot.lane.b32.xlu0 %v256, 127
        %v269 = vpop.permute.xlu0 %268
        %270 = vrot.lane.b32.xlu0 %v258, 127
        %v271 = vpop.permute.xlu0 %270
        %272 = vrot.lane.b32.xlu0 %v260, 127
        %v273 = vpop.permute.xlu0 %272
        %274 = vrot.lane.b32.xlu0 %v262, 127
        %v275 = vpop.permute.xlu0 %274
        %v280 = vmax.f32 %v256, %v269
        %v281 = vmax.f32 %v258, %v271
        %v282 = vmax.f32 %v260, %v273
        %v283 = vmax.f32 %v262, %v275
        %vm288 = vcmask 1046528
        %v289 = vrot.slane %v256, 1
        %v290 = vrot.slane %v257, 1
        %v291 = vsel %vm288, %v289, %v290
        %v292 = vrot.slane %v258, 1
        %v293 = vrot.slane %v259, 1
        %v294 = vsel %vm288, %v292, %v293
        %v295 = vrot.slane %v260, 1
        %v296 = vrot.slane %v261, 1
        %v297 = vsel %vm288, %v295, %v296
        %v298 = vrot.slane %v262, 1
        %v299 = vrot.slane %v263, 1
        %v300 = vsel %vm288, %v298, %v299
        %v305 = vmax.f32 %v280, %v291
        %v306 = vmax.f32 %v281, %v294
        %v307 = vmax.f32 %v282, %v297
        %v308 = vmax.f32 %v283, %v300
        %309 = vrot.lane.b32.xlu0 %v291, 127
        %v310 = vpop.permute.xlu0 %309
        %311 = vrot.lane.b32.xlu0 %v294, 127
        %v312 = vpop.permute.xlu0 %311
        %313 = vrot.lane.b32.xlu0 %v297, 127
        %v314 = vpop.permute.xlu0 %313
        %315 = vrot.lane.b32.xlu0 %v300, 127
        %v316 = vpop.permute.xlu0 %315
        %v321 = vmax.f32 %v305, %v310
        %v322 = vmax.f32 %v306, %v312
        %v323 = vmax.f32 %v307, %v314
        %v324 = vmax.f32 %v308, %v316
        %v325 = vld [vmem:[%s245] sm:$0xff]
        %v326 = vld [vmem:[%s245 + $0x8] sm:$0x1]
        %v327 = vld [vmem:[%s245 + $0x10] sm:$0xff]
        %v328 = vld [vmem:[%s245 + $0x18] sm:$0x1]
        %v329 = vld [vmem:[%s245 + $0x20] sm:$0xff]
        %v330 = vld [vmem:[%s245 + $0x28] sm:$0x1]
        %v331 = vld [vmem:[%s245 + $0x30] sm:$0xff]
        %v332 = vld [vmem:[%s245 + $0x38] sm:$0x1]
        %v333 = vmax.f32 %v321, %v325
        %v334 = vmax.f32 %v322, %v327
        %v335 = vmax.f32 %v323, %v329
        %v336 = vmax.f32 %v324, %v331
        %v345 = vrot.slane %v325, 1
        %v346 = vrot.slane %v326, 1
        %v347 = vsel %vm288, %v345, %v346
        %v348 = vrot.slane %v327, 1
        %v349 = vrot.slane %v328, 1
        %v350 = vsel %vm288, %v348, %v349
        %v351 = vrot.slane %v329, 1
        %v352 = vrot.slane %v330, 1
        %v353 = vsel %vm288, %v351, %v352
        %v354 = vrot.slane %v331, 1
        %v355 = vrot.slane %v332, 1
        %v356 = vsel %vm288, %v354, %v355
        %v361 = vmax.f32 %v333, %v347
        %v362 = vmax.f32 %v334, %v350
        %v363 = vmax.f32 %v335, %v353
        %v364 = vmax.f32 %v336, %v356
        %v365 = vld [vmem:[%s250] sm:$0xff]
        %v366 = vld [vmem:[%s250 + $0x8] sm:$0xff]
        %v367 = vld [vmem:[%s250 + $0x10] sm:$0xff]
        %v368 = vld [vmem:[%s250 + $0x18] sm:$0xff]
        %v369 = vmax.f32 %v361, %v365
        %v370 = vmax.f32 %v362, %v366
        %v371 = vmax.f32 %v363, %v367
        %v372 = vmax.f32 %v364, %v368
        %377 = vrot.lane.b32.xlu0 %v365, 127
        %v378 = vpop.permute.xlu0 %377
        %379 = vrot.lane.b32.xlu0 %v366, 127
        %v380 = vpop.permute.xlu0 %379
        %381 = vrot.lane.b32.xlu0 %v367, 127
        %v382 = vpop.permute.xlu0 %381
        %383 = vrot.lane.b32.xlu0 %v368, 127
        %v384 = vpop.permute.xlu0 %383
        %v389 = vmax.f32 %v369, %v378
        %v390 = vmax.f32 %v370, %v380
        %v391 = vmax.f32 %v371, %v382
        %v392 = vmax.f32 %v372, %v384
        %v393 = vld [vmem:[%s255] sm:$0xff]
        %v394 = vld [vmem:[%s255 + $0x8] sm:$0xff]
        %v395 = vld [vmem:[%s255 + $0x10] sm:$0xff]
        %v396 = vld [vmem:[%s255 + $0x18] sm:$0xff]
        %v397 = vmax.f32 %v389, %v393
        %v398 = vmax.f32 %v390, %v394
        %v399 = vmax.f32 %v391, %v395
        %v400 = vmax.f32 %v392, %v396
        %vm401 = vcmask 64512
        %402 = vst.msk [vmem:[%s235] sm:$0xff] %vm401, %v397
        %403 = vst.msk [vmem:[%s235 + $0x8] sm:$0xff] %vm401, %v398
        %404 = vst.msk [vmem:[%s235 + $0x10] sm:$0xff] %vm401, %v399
        %405 = vst.msk [vmem:[%s235 + $0x18] sm:$0xff] %vm401, %v400
        %s406 = sand.u32 %s130, 1
        %s407 = scalar_lea.sflag [#allocation3], %s406
        %s408 = sand.u32 %s130, 1
        %s409 = smul.addr %s408, 32
        %s410 = scalar_lea.vmem [#allocation2], %s409
        // Predicated region
        $region37: #{tpu_custom_call.1} parent=35 // pred_check
          %p411 = pneg %p140
        $region38: #{tpu_custom_call.1} parent=35 // pred_check_branch
          %413 = sbr.rel (%p411) target = $region40
        $region39: #{tpu_custom_call.1} parent=35 // pred_region
          %415 = vsyncadd %s407, 0
          %s416 = smul.addr %s18, 4
          %s417 = smul.addr %s416, 8
          %s418 = scalar_lea.hbm %s4, %s417
          %s419 = sshll.u32 %s410, 4
          %s420 = int_to_ptr.vmem [resolvable:$true] %s419
          %s421 = sshll.u32 %s418, 4
          %s422 = int_to_ptr.hbm [resolvable:$true] %s421
          %427 = dma.vmem_to_hbm [thread:$0]  %s420, 512, %s422, %s407, 128, 128, 8
        $region40: #{tpu_custom_call.1} parent=35 // pred_fallthru
          _
      $region36: #{tpu_custom_call.1} parent=5 // pred_fallthru
        _
      %p428 = scmp.le.s32.totalorder 2, %s13
      // Predicated region
      $region41: #{tpu_custom_call.1} parent=5 // pred_check
        %p429 = pneg %p428
      $region42: #{tpu_custom_call.1} parent=5 // pred_check_branch
        %431 = sbr.rel (%p429) target = $region44
      $region43: #{tpu_custom_call.1} parent=5 // pred_region
        %s432 = ssub.s32 %s13, 2
        // Predicated region
        $region45: #{tpu_custom_call.1} parent=43 // pred_check
          %p433 = pneg %p146
        $region46: #{tpu_custom_call.1} parent=43 // pred_check_branch
          %435 = sbr.rel (%p433) target = $region48
        $region47: #{tpu_custom_call.1} parent=43 // pred_region
          %s436 = sand.u32 %s131, 1
          %s437 = scalar_lea.sflag [#allocation3], %s436
          %s438 = sand.u32 %s131, 1
          %s439 = smul.addr %s438, 32
          %s440 = scalar_lea.vmem [#allocation2], %s439
          %442 = dma.done %s437, 512
        $region48: #{tpu_custom_call.1} parent=43 // pred_fallthru
          _
      $region44: #{tpu_custom_call.1} parent=5 // pred_fallthru
        _
    $region6: #{tpu_custom_call.1} parent=1 // loop_footer
      %s17 = sadd.s32 1, %s13
    $region7: #{tpu_custom_call.1} parent=1 // loop_footer_branch
      %12 = sbr.rel target = $region3
    $region8: #{tpu_custom_call.1} parent=1 // loop_exit
      _
    %443 = vsyncpa [#allocation3], 1
    %s444 = scalar_lea.sflag [#allocation3], 1
    %445 = vsyncpa %s444, 1

</llo_original>
